<compile_context>
chip_gen: v7x
topology: tpu7x:2x2x1
jax: 0.10.0
libtpu: 0.0.40
codegen_flags: <defaults>
</compile_context>

<pallas_src>
import functools

import jax
import jax.numpy as jnp
from jax.experimental import pallas as pl
from jax.experimental.pallas import tpu as pltpu

LANE = 128


def _round_up(x, m):
    return ((x + m - 1) // m) * m


def _pad2d(a, rows, cols, dtype):
    out = jnp.zeros((rows, cols), dtype)
    return out.at[: a.shape[0], : a.shape[1]].set(a.astype(dtype))


def _sage_layer_kernel(adj_ref, xs_ref, xk_ref, w_ref, b_ref, o_ref, acc_ref, *,
                       f_pad, apply_relu):
    """One SAGEConv(mean) layer, tiled over (row tiles, k reduction tiles).

    adj_ref: (tm, tk)        bf16 row-normalized in-adjacency tile
    xs_ref:  (tm, f_pad)     bf16 features of the destination (self) rows
    xk_ref:  (tk, f_pad)     bf16 features of the source rows for this k tile
    w_ref:   (2*f_pad, fo_pad) f32 fused [W_self ; W_neigh] (already transposed)
    b_ref:   (1, fo_pad)     f32 bias
    o_ref:   (tm, fo_pad)    output tile (resident across the k axis)
    acc_ref: (tm, 2*f_pad)   f32 scratch: [:, :f_pad] self feats, [:, f_pad:] neigh sum
    """
    k = pl.program_id(1)

    @pl.when(k == 0)
    def _init():
        acc_ref[:, :f_pad] = xs_ref[...].astype(jnp.float32)
        acc_ref[:, f_pad:] = jnp.zeros(
            (acc_ref.shape[0], acc_ref.shape[1] - f_pad), jnp.float32)

    # adj is row-normalized, so summing adj_tile @ x_tile over k == mean
    # over in-neighbors (zero rows -> zero neighbor feature).
    acc_ref[:, f_pad:] += jnp.dot(
        adj_ref[...], xk_ref[...], preferred_element_type=jnp.float32)

    @pl.when(k == pl.num_programs(1) - 1)
    def _finalize():
        # single fused projection: [x_self | neigh] @ [W_self ; W_neigh] + bias
        out = jnp.dot(acc_ref[...], w_ref[...],
                      preferred_element_type=jnp.float32) + b_ref[...]
        if apply_relu:
            out = jnp.maximum(out, 0.0)
        o_ref[...] = out.astype(o_ref.dtype)


def sage_layer(adj_p, x_p, w_fused, bias_p, *, apply_relu, out_dtype,
               tm=128, tk=128):
    """adj_p: (Np, Np) bf16; x_p: (Np, Fp) bf16; w_fused: (2*Fp, Fop) f32; bias_p: (1, Fop) f32."""
    n_pad = adj_p.shape[0]
    f_pad = x_p.shape[1]
    fo_pad = w_fused.shape[1]
    assert n_pad % tm == 0 and n_pad % tk == 0
    assert f_pad % LANE == 0 and fo_pad % LANE == 0

    grid = (n_pad // tm, n_pad // tk)   # reduction (k) axis last

    kernel = functools.partial(_sage_layer_kernel, f_pad=f_pad,
                               apply_relu=apply_relu)

    return pl.pallas_call(
        kernel,
        out_shape=jax.ShapeDtypeStruct((n_pad, fo_pad), out_dtype),
        grid_spec=pltpu.PrefetchScalarGridSpec(
            num_scalar_prefetch=0,
            grid=grid,
            in_specs=[
                pl.BlockSpec((tm, tk), lambda i, k: (i, k)),             # adj tile
                pl.BlockSpec((tm, f_pad), lambda i, k: (i, 0)),          # x (self rows)
                pl.BlockSpec((tk, f_pad), lambda i, k: (k, 0)),          # x (neighbor rows)
                pl.BlockSpec((2 * f_pad, fo_pad), lambda i, k: (0, 0)),  # fused weights
                pl.BlockSpec((1, fo_pad), lambda i, k: (0, 0)),          # bias
            ],
            out_specs=pl.BlockSpec((tm, fo_pad), lambda i, k: (i, 0)),
            scratch_shapes=[pltpu.VMEM((tm, 2 * f_pad), jnp.float32)],
        ),
        compiler_params=pltpu.CompilerParams(
            dimension_semantics=("parallel", "arbitrary"),
            vmem_limit_bytes=32 * 1024 * 1024,
        ),
    )(adj_p, x_p, x_p, w_fused, bias_p)


def sage_forward(adj, x, params, *, tm=128, tk=128):
    """SAGE.forward: conv1 -> relu -> conv2 (relu fused into the layer-1 kernel)."""
    n, in_feats = x.shape
    hid = params["w1_self"].shape[1]
    out_feats = params["w2_self"].shape[1]

    n_pad = _round_up(n, max(tm, tk))
    f1 = _round_up(in_feats, LANE)
    f2 = _round_up(hid, LANE)
    f3 = _round_up(out_feats, LANE)

    # bf16 adjacency / features (f32 MXU accumulation inside the kernel).
    adj_p = _pad2d(adj, n_pad, n_pad, jnp.bfloat16)
    x_p = _pad2d(x, n_pad, f1, jnp.bfloat16)

    # fused [W_self ; W_neigh] per layer, padded to lane-dense shapes.
    w1 = jnp.concatenate([
        _pad2d(params["w1_self"], f1, f2, jnp.float32),
        _pad2d(params["w1_neigh"], f1, f2, jnp.float32)], axis=0)
    b1 = _pad2d(params["b1"].reshape(1, -1), 1, f2, jnp.float32)

    w2 = jnp.concatenate([
        _pad2d(params["w2_self"], f2, f3, jnp.float32),
        _pad2d(params["w2_neigh"], f2, f3, jnp.float32)], axis=0)
    b2 = _pad2d(params["b2"].reshape(1, -1), 1, f3, jnp.float32)

    # layer 1 (+fused relu); keep the intermediate padded & bf16 so layer 2
    # consumes it directly (no HBM re-layout, halved intermediate traffic).
    h = sage_layer(adj_p, x_p, w1, b1, apply_relu=True,
                   out_dtype=jnp.bfloat16, tm=tm, tk=tk)
    out = sage_layer(adj_p, h, w2, b2, apply_relu=False,
                     out_dtype=jnp.float32, tm=tm, tk=tk)
    return out[:n, :out_feats]


def make_params(key, in_feats, hid_feats, out_feats):
    ks = jax.random.split(key, 4)
    scale1 = 1.0 / jnp.sqrt(in_feats)
    scale2 = 1.0 / jnp.sqrt(hid_feats)
    return {
        # stored as [F_in, F_out] (i.e. nn.Linear weight transposed)
        "w1_self": jax.random.normal(ks[0], (in_feats, hid_feats), jnp.float32) * scale1,
        "w1_neigh": jax.random.normal(ks[1], (in_feats, hid_feats), jnp.float32) * scale1,
        "b1": jnp.zeros((hid_feats,), jnp.float32),
        "w2_self": jax.random.normal(ks[2], (hid_feats, out_feats), jnp.float32) * scale2,
        "w2_neigh": jax.random.normal(ks[3], (hid_feats, out_feats), jnp.float32) * scale2,
        "b2": jnp.zeros((out_feats,), jnp.float32),
    }


def make_graph(key, n_nodes):
    """Deterministic random directed graph -> row-normalized in-adjacency (f32)."""
    a = jax.random.bernoulli(key, p=0.3, shape=(n_nodes, n_nodes)).astype(jnp.float32)
    a = a * (1.0 - jnp.eye(n_nodes, dtype=jnp.float32))  # no self loops
    deg = a.sum(axis=1, keepdims=True)                   # in-degree per dst row
    return a / jnp.maximum(deg, 1.0)                     # zero rows stay zero (mean=0)


if __name__ == "__main__":
    N = 200          # nodes (padded to 256 -> 2x2 grid, exercises the pipeline)
    IN_FEATS = 8
    HID_FEATS = 32
    OUT_FEATS = 8

    root = jax.random.PRNGKey(0)
    k_graph, k_feat, k_param = jax.random.split(root, 3)

    adj = make_graph(k_graph, N)                                  # [N, N]
    x = jax.random.normal(k_feat, (N, IN_FEATS), jnp.float32)     # [N, Fin]
    params = make_params(k_param, IN_FEATS, HID_FEATS, OUT_FEATS)

    out = jax.block_until_ready(sage_forward(adj, x, params))

    assert out.shape == (N, OUT_FEATS), out.shape
    assert out.dtype == jnp.float32

    # Reference in plain JAX with matching bf16 rounding of adj / features.
    adj_b = adj.astype(jnp.bfloat16)
    x_b = x.astype(jnp.bfloat16)

    def ref_layer(a_b, h_b, ws, wn, b, relu):
        neigh = jnp.dot(a_b, h_b, preferred_element_type=jnp.float32)
        o = (jnp.dot(h_b.astype(jnp.float32), ws,
                     precision=jax.lax.Precision.HIGHEST)
             + jnp.dot(neigh, wn, precision=jax.lax.Precision.HIGHEST)
             + b)
        return jnp.maximum(o, 0.0) if relu else o

    h_ref = ref_layer(adj_b, x_b, params["w1_self"], params["w1_neigh"],
                      params["b1"], True)
    h_ref_b = h_ref.astype(jnp.bfloat16)   # kernel stores the intermediate in bf16
    ref = ref_layer(adj_b, h_ref_b, params["w2_self"], params["w2_neigh"],
                    params["b2"], False)

    err = jnp.max(jnp.abs(out - ref))
    assert jnp.allclose(out, ref, atol=2e-2, rtol=2e-2), float(err)

    print("KERNEL_OK")
</pallas_src>

<mosaic_0001>
module attributes {stable_mosaic.version = 11 : i64} {
  func.func @_sage_layer_kernel(%arg0: i32, %arg1: i32, %arg2: memref<128x128xbf16, #tpu.memory_space<vmem>>, %arg3: memref<128x128xbf16, #tpu.memory_space<vmem>>, %arg4: memref<128x128xbf16, #tpu.memory_space<vmem>>, %arg5: memref<256x128xf32, #tpu.memory_space<vmem>>, %arg6: memref<1x128xf32, #tpu.memory_space<vmem>>, %arg7: memref<128x128xbf16, #tpu.memory_space<vmem>>, %arg8: memref<128x256xf32, #tpu.memory_space<vmem>>) attributes {dimension_semantics = [#tpu.dimension_semantics<parallel>, #tpu.dimension_semantics<arbitrary>], iteration_bounds = array<i64: 2, 2>, scalar_prefetch = 0 : i64, scratch_operands = 1 : i64, tpu.core_type = #tpu.core_type<tc>, window_params = [{transform_indices = @transform_0, window_bounds = array<i64: 128, 128>}, {transform_indices = @transform_1, window_bounds = array<i64: 128, 128>}, {transform_indices = @transform_2, window_bounds = array<i64: 128, 128>}, {pipeline_mode = #tpu.pipeline_mode<synchronous>, transform_indices = @transform_3, window_bounds = array<i64: 256, 128>}, {pipeline_mode = #tpu.pipeline_mode<synchronous>, transform_indices = @transform_4, window_bounds = array<i64: 1, 128>}, {transform_indices = @transform_5, window_bounds = array<i64: 128, 128>}]} {
    %c0_i32 = arith.constant 0 : i32
    %0 = arith.cmpi eq, %arg1, %c0_i32 : i32
    %1 = arith.extui %0 : i1 to i32
    %c0_i32_0 = arith.constant 0 : i32
    %2 = arith.cmpi ne, %1, %c0_i32_0 : i32
    scf.if %2 {
      %c0_8 = arith.constant 0 : index
      %c0_9 = arith.constant 0 : index
      %12 = vector.load %arg3[%c0_8, %c0_9] : memref<128x128xbf16, #tpu.memory_space<vmem>>, vector<128x128xbf16>
      %13 = arith.extf %12 : vector<128x128xbf16> to vector<128x128xf32>
      %c0_10 = arith.constant 0 : index
      %c0_11 = arith.constant 0 : index
      %14 = vector.load %arg8[%c0_10, %c0_11] : memref<128x256xf32, #tpu.memory_space<vmem>>, vector<128x128xf32>
      tpu.vector_store %arg8[%c0_10, %c0_11], %13 {strides = array<i32>} : memref<128x256xf32, #tpu.memory_space<vmem>>, vector<128x128xf32>,
      %cst_12 = arith.constant 0.000000e+00 : f32
      %15 = vector.broadcast %cst_12 : f32 to vector<128x128xf32>
      %c0_13 = arith.constant 0 : index
      %c128_14 = arith.constant 128 : index
      %16 = vector.load %arg8[%c0_13, %c128_14] : memref<128x256xf32, #tpu.memory_space<vmem>>, vector<128x128xf32>
      tpu.vector_store %arg8[%c0_13, %c128_14], %15 {strides = array<i32>} : memref<128x256xf32, #tpu.memory_space<vmem>>, vector<128x128xf32>,
    } else {
    }
    %c0 = arith.constant 0 : index
    %c128 = arith.constant 128 : index
    %3 = vector.load %arg8[%c0, %c128] : memref<128x256xf32, #tpu.memory_space<vmem>>, vector<128x128xf32>
    %c0_1 = arith.constant 0 : index
    %c0_2 = arith.constant 0 : index
    %4 = vector.load %arg2[%c0_1, %c0_2] : memref<128x128xbf16, #tpu.memory_space<vmem>>, vector<128x128xbf16>
    %c0_3 = arith.constant 0 : index
    %c0_4 = arith.constant 0 : index
    %5 = vector.load %arg4[%c0_3, %c0_4] : memref<128x128xbf16, #tpu.memory_space<vmem>>, vector<128x128xbf16>
    %cst = arith.constant dense<0.000000e+00> : vector<128x128xf32>
    %6 = tpu.matmul %4, %5, %cst {dimension_numbers = #tpu.dot_dimension_numbers<[1], [0], [0], [1], [0, 0, 1, 1], [], []>} : vector<128x128xbf16>, vector<128x128xbf16>, vector<128x128xf32> -> vector<128x128xf32>
    %7 = arith.addf %3, %6 : vector<128x128xf32>
    %c0_5 = arith.constant 0 : index
    %c128_6 = arith.constant 128 : index
    %8 = vector.load %arg8[%c0_5, %c128_6] : memref<128x256xf32, #tpu.memory_space<vmem>>, vector<128x128xf32>
    tpu.vector_store %arg8[%c0_5, %c128_6], %7 {strides = array<i32>} : memref<128x256xf32, #tpu.memory_space<vmem>>, vector<128x128xf32>,
    %c1_i32 = arith.constant 1 : i32
    %9 = arith.cmpi eq, %arg1, %c1_i32 : i32
    %10 = arith.extui %9 : i1 to i32
    %c0_i32_7 = arith.constant 0 : i32
    %11 = arith.cmpi ne, %10, %c0_i32_7 : i32
    scf.if %11 {
      %c0_8 = arith.constant 0 : index
      %c0_9 = arith.constant 0 : index
      %12 = vector.load %arg8[%c0_8, %c0_9] : memref<128x256xf32, #tpu.memory_space<vmem>>, vector<128x256xf32>
      %c0_10 = arith.constant 0 : index
      %c0_11 = arith.constant 0 : index
      %13 = vector.load %arg5[%c0_10, %c0_11] : memref<256x128xf32, #tpu.memory_space<vmem>>, vector<256x128xf32>
      %cst_12 = arith.constant dense<0.000000e+00> : vector<128x128xf32>
      %14 = tpu.matmul %12, %13, %cst_12 {dimension_numbers = #tpu.dot_dimension_numbers<[1], [0], [0], [1], [0, 0, 1, 1], [], []>} : vector<128x256xf32>, vector<256x128xf32>, vector<128x128xf32> -> vector<128x128xf32>
      %c0_13 = arith.constant 0 : index
      %c0_14 = arith.constant 0 : index
      %15 = vector.load %arg6[%c0_13, %c0_14] : memref<1x128xf32, #tpu.memory_space<vmem>>, vector<1x128xf32>
      %16 = vector.broadcast %15 : vector<1x128xf32> to vector<128x128xf32>
      %17 = arith.addf %14, %16 : vector<128x128xf32>
      %cst_15 = arith.constant 0.000000e+00 : f32
      %18 = vector.broadcast %cst_15 : f32 to vector<128x128xf32>
      %19 = arith.maximumf %17, %18 : vector<128x128xf32>
      %20 = arith.truncf %19 : vector<128x128xf32> to vector<128x128xbf16>
      %c0_16 = arith.constant 0 : index
      %c0_17 = arith.constant 0 : index
      %21 = vector.load %arg7[%c0_16, %c0_17] : memref<128x128xbf16, #tpu.memory_space<vmem>>, vector<128x128xbf16>
      tpu.vector_store %arg7[%c0_16, %c0_17], %20 {strides = array<i32>} : memref<128x128xbf16, #tpu.memory_space<vmem>>, vector<128x128xbf16>,
    } else {
    }
    return
  }
  func.func @transform_0(%arg0: i32, %arg1: i32) -> (i32, i32) {
    %c0_i32 = arith.constant 0 : i32
    return %arg0, %arg1 : i32, i32
  }
  func.func @transform_1(%arg0: i32, %arg1: i32) -> (i32, i32) {
    %c0_i32 = arith.constant 0 : i32
    %c0_i32_0 = arith.constant 0 : i32
    return %arg0, %c0_i32 : i32, i32
  }
  func.func @transform_2(%arg0: i32, %arg1: i32) -> (i32, i32) {
    %c0_i32 = arith.constant 0 : i32
    %c0_i32_0 = arith.constant 0 : i32
    return %arg1, %c0_i32 : i32, i32
  }
  func.func @transform_3(%arg0: i32, %arg1: i32) -> (i32, i32) {
    %c0_i32 = arith.constant 0 : i32
    %c0_i32_0 = arith.constant 0 : i32
    %c0_i32_1 = arith.constant 0 : i32
    return %c0_i32, %c0_i32_0 : i32, i32
  }
  func.func @transform_4(%arg0: i32, %arg1: i32) -> (i32, i32) {
    %c0_i32 = arith.constant 0 : i32
    %c0_i32_0 = arith.constant 0 : i32
    %c0_i32_1 = arith.constant 0 : i32
    return %c0_i32, %c0_i32_0 : i32, i32
  }
  func.func @transform_5(%arg0: i32, %arg1: i32) -> (i32, i32) {
    %c0_i32 = arith.constant 0 : i32
    %c0_i32_0 = arith.constant 0 : i32
    return %arg0, %c0_i32 : i32, i32
  }
}

</mosaic_0001>

<llo_original>
// kernel: tpu_custom_call.1
$region0: #{tpu_custom_call.1}
  #allocation0 [shape = 'u32[]', space=smem, size = 0x4, offset = 0x4, fixed_abs, tag = 'smem constant byte address 0x4 - core index']
  #allocation1 [shape = 'u32[144,128]{1,0:T(1,128)}', space=vmem, size = 0x12000, scoped, tag = 'internal scratch']
  #allocation2 [shape = 'f32[128,256]{1,0:T(8,128)}', space=vmem, size = 0x20000, scoped, tag = 'scratch operand']
  %s0 = inlined_call_operand.hbm [shape: bf16[256,256], index: 0, kind: input, shape index: {}]
  %s1 = inlined_call_operand.hbm [shape: bf16[256,128], index: 1, kind: input, shape index: {}]
  %s2 = inlined_call_operand.hbm [shape: bf16[256,128], index: 2, kind: input, shape index: {}]
  %s3 = inlined_call_operand.hbm [shape: f32[256,128], index: 3, kind: input, shape index: {}]
  %s4 = inlined_call_operand.vmem [shape: f32[1,128], index: 4, kind: input, shape index: {}]
  %s5 = inlined_call_operand.hbm [shape: bf16[256,128], index: 5, kind: output, shape index: {}]
  %s6 = sld [smem:[#allocation0]]
  $region77: #{tpu_custom_call.1} parent=0
    _
  %s8 = ssub.s32 1, %s6
  %s9 = scalar_select 0, %s8, %s6
  $region1: #{tpu_custom_call.1} parent=0
    #allocation3 [shape = 'u8[65536]{0}', space=vmem, size = 0x10000, scoped, tag = 'input window, operand 0']
    #allocation4 [shape = 's32[2]{0}', space=sflag, size = 0x8, scoped, tag = 'scoped memory for tpu_custom_call.1']
    #allocation5 [shape = 's32[2]{0}', space=sflag, size = 0x8, scoped, tag = 'scoped memory for tpu_custom_call.1']
    #allocation6 [shape = 'u8[65536]{0}', space=vmem, size = 0x10000, scoped, tag = 'input window, operand 1']
    #allocation7 [shape = 's32[2]{0}', space=sflag, size = 0x8, scoped, tag = 'scoped memory for tpu_custom_call.1']
    #allocation8 [shape = 'u8[65536]{0}', space=vmem, size = 0x10000, scoped, tag = 'input window, operand 2']
    #allocation9 [shape = 'u8[131072]{0}', space=vmem, size = 0x20000, scoped, tag = 'input window, operand 3, single buffered']
    #allocation10 [shape = 's32[1]{0}', space=sflag, size = 0x4, scoped, tag = 'scoped memory for tpu_custom_call.1']
    #allocation11 [shape = 'u8[65536]{0}', space=vmem, size = 0x10000, scoped, tag = 'output window, operand 0']
    %10 = vsyncpa [#allocation4], 0
    %s11 = scalar_lea.sflag [#allocation4], 1
    %12 = vsyncpa %s11, 0
    %13 = vsyncpa [#allocation7], 0
    %s14 = scalar_lea.sflag [#allocation7], 1
    %15 = vsyncpa %s14, 0
    %16 = vsyncpa [#allocation10], 0
    %17 = vsyncpa [#allocation5], 0
    %s18 = scalar_lea.sflag [#allocation5], 1
    %19 = vsyncpa %s18, 0
    loop: start=0, step=1, limit=6
    $region2: #{tpu_custom_call.1} parent=1 // loop_pre_header
      _
    $region3: #{tpu_custom_call.1} parent=1 // loop_header
      %s21 = sphi 0, %s25
      %p22 = scmp.ge.s32.totalorder %s21, 6
      %s28 = sphi 0, %s40
      %s29 = sphi 0, %s36
      %s30 = sphi 0, %s28
      %s31 = sphi 0, %s29
      %s32 = sphi 0, %s30
      %s33 = sphi 0, %s31
      %s45 = sphi 0, %s47
      %s48 = sphi 0, %s45
      %s49 = sphi 0, %s48
      %s65 = sphi 0, %s49
      %s71 = sphi 0, %s73
      %s74 = sphi 0, %s71
      %s75 = sphi 0, %s74
      %s91 = sphi 0, %s75
      %s97 = sphi 0, %s99
      %s100 = sphi 0, %s97
      %s101 = sphi 0, %s100
      %s117 = sphi 0, %s101
      %s121 = sphi 0, %s121
      %s123 = sphi 0, %s121
      %s124 = sphi 0, %s123
      %s138 = sphi 0, %s124
      %s142 = sphi 0, %s142
      %s144 = sphi 0, %s142
      %s145 = sphi 0, %s144
      %s159 = sphi 0, %s145
      %s165 = sphi 0, %s167
      %s168 = sphi 0, %s165
      %s169 = sphi 0, %s168
      %s185 = sphi 0, %s169
    $region4: #{tpu_custom_call.1} parent=1 // loop_header_branch
      %24 = sbr.rel (%p22) target = $region8
    $region5: #{tpu_custom_call.1} parent=1 // loop_body
      %s26 = ssub.s32 %s21, 1
      %s27 = ssub.s32 %s21, 2
      %s34 = sadd.s32 1, %s29
      %p35 = scmp.ge.s32.totalorder %s34, 2
      %s36 = scalar_select %p35, 0, %s34
      %s37 = sadd.s32 1, %s28
      %s38 = scalar_select %p35, %s37, %s28
      %p39 = scmp.ge.s32.totalorder %s38, 2
      %s40 = scalar_select %p39, 0, %s38
      %s41 = ssub.s32 %s28, %s40
      %s42 = ssub.s32 %s29, %s36
      %s43 = sor.u32 %s41, %s42
      %p44 = scmp.eq.s32.totalorder %s43, 0
      %s46 = sadd.s32 %s45, 1
      %s47 = scalar_select %p44, %s45, %s46
      %p50 = pneg %p44
      %p51 = scmp.eq.s32.totalorder %s21, 3
      %p52 = por %p50, %p51
      %p53 = scmp.ne.s32.totalorder %s45, %s48
      %p54 = scmp.eq.s32.totalorder %s21, 0
      %p55 = por %p53, %p54
      %p56 = scmp.ne.s32.totalorder %s45, %s48
      %p57 = scmp.eq.s32.totalorder %s26, 3
      %p58 = por %p56, %p57
      %p59 = scmp.ne.s32.totalorder %s48, %s49
      %p60 = scmp.eq.s32.totalorder %s26, 0
      %p61 = por %p59, %p60
      %p62 = scmp.ne.s32.totalorder %s48, %s49
      %p63 = scmp.eq.s32.totalorder %s27, 3
      %p64 = por %p62, %p63
      %p66 = scmp.ne.s32.totalorder %s49, %s65
      %p67 = scmp.eq.s32.totalorder %s27, 0
      %p68 = por %p66, %p67
      %s69 = ssub.s32 %s28, %s40
      %p70 = scmp.eq.s32.totalorder %s69, 0
      %s72 = sadd.s32 %s71, 1
      %s73 = scalar_select %p70, %s71, %s72
      %p76 = pneg %p70
      %p77 = scmp.eq.s32.totalorder %s21, 3
      %p78 = por %p76, %p77
      %p79 = scmp.ne.s32.totalorder %s71, %s74
      %p80 = scmp.eq.s32.totalorder %s21, 0
      %p81 = por %p79, %p80
      %p82 = scmp.ne.s32.totalorder %s71, %s74
      %p83 = scmp.eq.s32.totalorder %s26, 3
      %p84 = por %p82, %p83
      %p85 = scmp.ne.s32.totalorder %s74, %s75
      %p86 = scmp.eq.s32.totalorder %s26, 0
      %p87 = por %p85, %p86
      %p88 = scmp.ne.s32.totalorder %s74, %s75
      %p89 = scmp.eq.s32.totalorder %s27, 3
      %p90 = por %p88, %p89
      %p92 = scmp.ne.s32.totalorder %s75, %s91
      %p93 = scmp.eq.s32.totalorder %s27, 0
      %p94 = por %p92, %p93
      %s95 = ssub.s32 %s29, %s36
      %p96 = scmp.eq.s32.totalorder %s95, 0
      %s98 = sadd.s32 %s97, 1
      %s99 = scalar_select %p96, %s97, %s98
      %p102 = pneg %p96
      %p103 = scmp.eq.s32.totalorder %s21, 3
      %p104 = por %p102, %p103
      %p105 = scmp.ne.s32.totalorder %s97, %s100
      %p106 = scmp.eq.s32.totalorder %s21, 0
      %p107 = por %p105, %p106
      %p108 = scmp.ne.s32.totalorder %s97, %s100
      %p109 = scmp.eq.s32.totalorder %s26, 3
      %p110 = por %p108, %p109
      %p111 = scmp.ne.s32.totalorder %s100, %s101
      %p112 = scmp.eq.s32.totalorder %s26, 0
      %p113 = por %p111, %p112
      %p114 = scmp.ne.s32.totalorder %s100, %s101
      %p115 = scmp.eq.s32.totalorder %s27, 3
      %p116 = por %p114, %p115
      %p118 = scmp.ne.s32.totalorder %s101, %s117
      %p119 = scmp.eq.s32.totalorder %s27, 0
      %p120 = por %p118, %p119
      %s122 = sadd.s32 %s121, 1
      %p125 = scmp.eq.s32.totalorder %s21, 3
      %p126 = scmp.ne.s32.totalorder %s121, %s123
      %p127 = scmp.eq.s32.totalorder %s21, 0
      %p128 = por %p126, %p127
      %p129 = scmp.ne.s32.totalorder %s121, %s123
      %p130 = scmp.eq.s32.totalorder %s26, 3
      %p131 = por %p129, %p130
      %p132 = scmp.ne.s32.totalorder %s123, %s124
      %p133 = scmp.eq.s32.totalorder %s26, 0
      %p134 = por %p132, %p133
      %p135 = scmp.ne.s32.totalorder %s123, %s124
      %p136 = scmp.eq.s32.totalorder %s27, 3
      %p137 = por %p135, %p136
      %p139 = scmp.ne.s32.totalorder %s124, %s138
      %p140 = scmp.eq.s32.totalorder %s27, 0
      %p141 = por %p139, %p140
      %s143 = sadd.s32 %s142, 1
      %p146 = scmp.eq.s32.totalorder %s21, 3
      %p147 = scmp.ne.s32.totalorder %s142, %s144
      %p148 = scmp.eq.s32.totalorder %s21, 0
      %p149 = por %p147, %p148
      %p150 = scmp.ne.s32.totalorder %s142, %s144
      %p151 = scmp.eq.s32.totalorder %s26, 3
      %p152 = por %p150, %p151
      %p153 = scmp.ne.s32.totalorder %s144, %s145
      %p154 = scmp.eq.s32.totalorder %s26, 0
      %p155 = por %p153, %p154
      %p156 = scmp.ne.s32.totalorder %s144, %s145
      %p157 = scmp.eq.s32.totalorder %s27, 3
      %p158 = por %p156, %p157
      %p160 = scmp.ne.s32.totalorder %s145, %s159
      %p161 = scmp.eq.s32.totalorder %s27, 0
      %p162 = por %p160, %p161
      %s163 = ssub.s32 %s28, %s40
      %p164 = scmp.eq.s32.totalorder %s163, 0
      %s166 = sadd.s32 %s165, 1
      %s167 = scalar_select %p164, %s165, %s166
      %p170 = pneg %p164
      %p171 = scmp.eq.s32.totalorder %s21, 3
      %p172 = por %p170, %p171
      %p173 = scmp.ne.s32.totalorder %s165, %s168
      %p174 = scmp.eq.s32.totalorder %s21, 0
      %p175 = por %p173, %p174
      %p176 = scmp.ne.s32.totalorder %s165, %s168
      %p177 = scmp.eq.s32.totalorder %s26, 3
      %p178 = por %p176, %p177
      %p179 = scmp.ne.s32.totalorder %s168, %s169
      %p180 = scmp.eq.s32.totalorder %s26, 0
      %p181 = por %p179, %p180
      %p182 = scmp.ne.s32.totalorder %s168, %s169
      %p183 = scmp.eq.s32.totalorder %s27, 3
      %p184 = por %p182, %p183
      %p186 = scmp.ne.s32.totalorder %s169, %s185
      %p187 = scmp.eq.s32.totalorder %s27, 0
      %p188 = por %p186, %p187
      %p189 = scmp.le.s32.totalorder 1, %s21
      %p190 = scmp.lt.s32.totalorder %s21, 5
      %p191 = pnand %p189, %p190
      %p192 = pneg %p191
      // Predicated region
      $region9: #{tpu_custom_call.1} parent=5 // pred_check
        _
      $region10: #{tpu_custom_call.1} parent=5 // pred_check_branch
        %194 = sbr.rel (%p191) target = $region12
      $region11: #{tpu_custom_call.1} parent=5 // pred_region
        %s195 = ssub.s32 %s21, 1
        // Predicated region
        $region13: #{tpu_custom_call.1} parent=11 // pred_check
          %p196 = pneg %p134
        $region14: #{tpu_custom_call.1} parent=11 // pred_check_branch
          %198 = sbr.rel (%p196) target = $region16
        $region15: #{tpu_custom_call.1} parent=11 // pred_region
          %s200 = ssub.s32 4096, 4096
          %201 = vsyncadd [#allocation10], %s200
          %s202 = sshll.u32 [#allocation9], 4
          %s203 = int_to_ptr.vmem [resolvable:$true] %s202
          %208 = dma.hbm_to_vmem [thread:$0]  %s3, 4096, %s203, [#allocation10], 128, 128, 8
        $region16: #{tpu_custom_call.1} parent=11 // pred_fallthru
          _
        // Predicated region
        $region17: #{tpu_custom_call.1} parent=11 // pred_check
          %p209 = pneg %p155
        $region18: #{tpu_custom_call.1} parent=11 // pred_check_branch
          %211 = sbr.rel (%p209) target = $region20
        $region19: #{tpu_custom_call.1} parent=11 // pred_region
          _
        $region20: #{tpu_custom_call.1} parent=11 // pred_fallthru
          _
      $region12: #{tpu_custom_call.1} parent=5 // pred_fallthru
        _
      %p212 = scmp.lt.s32.totalorder %s21, 4
      // Predicated region
      $region21: #{tpu_custom_call.1} parent=5 // pred_check
        %p213 = pneg %p212
      $region22: #{tpu_custom_call.1} parent=5 // pred_check_branch
        %215 = sbr.rel (%p213) target = $region24
      $region23: #{tpu_custom_call.1} parent=5 // pred_region
        // Predicated region
        $region25: #{tpu_custom_call.1} parent=23 // pred_check
          %p216 = pneg %p55
        $region26: #{tpu_custom_call.1} parent=23 // pred_check_branch
          %218 = sbr.rel (%p216) target = $region28
        $region27: #{tpu_custom_call.1} parent=23 // pred_region
          %s219 = sand.u32 %s45, 1
          %s220 = scalar_lea.sflag [#allocation4], %s219
          %s221 = sand.u32 %s45, 1
          %s222 = smul.addr %s221, 64
          %s223 = scalar_lea.vmem [#allocation3], %s222
          %s224 = smul.u32 16, %s28
          %s226 = ssub.s32 1024, 1024
          %227 = vsyncadd %s220, %s226
          %s228 = smul.addr %s224, 2
          %s229 = sadd.s32 %s29, %s228
          %s230 = smul.addr %s229, 64
          %s231 = scalar_lea.hbm %s0, %s230
          %s232 = sshll.u32 %s223, 4
          %s233 = int_to_ptr.vmem [resolvable:$true] %s232
          %238 = dma.hbm_to_vmem [thread:$0]  %s231, 1024, %s233, %s220, 128, 64, 4
        $region28: #{tpu_custom_call.1} parent=23 // pred_fallthru
          _
        // Predicated region
        $region29: #{tpu_custom_call.1} parent=23 // pred_check
          %p239 = pneg %p81
        $region30: #{tpu_custom_call.1} parent=23 // pred_check_branch
          %241 = sbr.rel (%p239) target = $region32
        $region31: #{tpu_custom_call.1} parent=23 // pred_region
          %s242 = sand.u32 %s21, 1
          %s243 = scalar_lea.sflag [#allocation7], %s242
          %s244 = sand.u32 %s71, 1
          %s245 = smul.addr %s244, 64
          %s246 = scalar_lea.vmem [#allocation6], %s245
          %s247 = smul.u32 16, %s28
          %s249 = ssub.s32 1024, 1024
          %250 = vsyncadd %s243, %s249
          %s251 = smul.addr %s247, 64
          %s252 = scalar_lea.hbm %s1, %s251
          %s253 = sshll.u32 %s246, 4
          %s254 = int_to_ptr.vmem [resolvable:$true] %s253
          %259 = dma.hbm_to_vmem [thread:$0]  %s252, 1024, %s254, %s243, 64, 64, 4
        $region32: #{tpu_custom_call.1} parent=23 // pred_fallthru
          _
        // Predicated region
        $region33: #{tpu_custom_call.1} parent=23 // pred_check
          %p260 = pneg %p107
        $region34: #{tpu_custom_call.1} parent=23 // pred_check_branch
          %262 = sbr.rel (%p260) target = $region36
        $region35: #{tpu_custom_call.1} parent=23 // pred_region
          %s263 = sand.u32 %s21, 1
          %s264 = scalar_lea.sflag [#allocation7], %s263
          %s265 = sand.u32 %s97, 1
          %s266 = smul.addr %s265, 64
          %s267 = scalar_lea.vmem [#allocation8], %s266
          %s268 = smul.u32 16, %s29
          %s270 = ssub.s32 1024, 1024
          %271 = vsyncadd %s264, %s270
          %s272 = smul.addr %s268, 64
          %s273 = scalar_lea.hbm %s2, %s272
          %s274 = sshll.u32 %s267, 4
          %s275 = int_to_ptr.vmem [resolvable:$true] %s274
          %280 = dma.hbm_to_vmem [thread:$0]  %s273, 1024, %s275, %s264, 64, 64, 4
        $region36: #{tpu_custom_call.1} parent=23 // pred_fallthru
          _
      $region24: #{tpu_custom_call.1} parent=5 // pred_fallthru
        _
      %p281 = scmp.le.s32.totalorder 1, %s21
      %p282 = scmp.lt.s32.totalorder %s21, 5
      %p283 = pnand %p281, %p282
      %p284 = pneg %p283
      // Predicated region
      $region37: #{tpu_custom_call.1} parent=5 // pred_check
        _
      $region38: #{tpu_custom_call.1} parent=5 // pred_check_branch
        %286 = sbr.rel (%p283) target = $region40
      $region39: #{tpu_custom_call.1} parent=5 // pred_region
        %s287 = ssub.s32 %s21, 1
        %s288 = sand.u32 %s48, 1
        %s289 = scalar_lea.sflag [#allocation4], %s288
        %s290 = sand.u32 %s48, 1
        %s291 = smul.addr %s290, 64
        %s292 = scalar_lea.vmem [#allocation3], %s291
        // Predicated region
        $region41: #{tpu_custom_call.1} parent=39 // pred_check
          %p293 = pneg %p61
        $region42: #{tpu_custom_call.1} parent=39 // pred_check_branch
          %295 = sbr.rel (%p293) target = $region44
        $region43: #{tpu_custom_call.1} parent=39 // pred_region
          %296 = dma.done %s289, 1024
        $region44: #{tpu_custom_call.1} parent=39 // pred_fallthru
          _
        %s297 = sand.u32 %s26, 1
        %s298 = scalar_lea.sflag [#allocation7], %s297
        %s299 = sand.u32 %s74, 1
        %s300 = smul.addr %s299, 64
        %s301 = scalar_lea.vmem [#allocation6], %s300
        // Predicated region
        $region45: #{tpu_custom_call.1} parent=39 // pred_check
          %p302 = pneg %p87
        $region46: #{tpu_custom_call.1} parent=39 // pred_check_branch
          %304 = sbr.rel (%p302) target = $region48
        $region47: #{tpu_custom_call.1} parent=39 // pred_region
          %305 = dma.done %s298, 1024
        $region48: #{tpu_custom_call.1} parent=39 // pred_fallthru
          _
        %s306 = sand.u32 %s26, 1
        %s307 = scalar_lea.sflag [#allocation7], %s306
        %s308 = sand.u32 %s100, 1
        %s309 = smul.addr %s308, 64
        %s310 = scalar_lea.vmem [#allocation8], %s309
        // Predicated region
        $region49: #{tpu_custom_call.1} parent=39 // pred_check
          %p311 = pneg %p113
        $region50: #{tpu_custom_call.1} parent=39 // pred_check_branch
          %313 = sbr.rel (%p311) target = $region52
        $region51: #{tpu_custom_call.1} parent=39 // pred_region
          %314 = dma.done %s307, 1024
        $region52: #{tpu_custom_call.1} parent=39 // pred_fallthru
          _
        // Predicated region
        $region53: #{tpu_custom_call.1} parent=39 // pred_check
          %p315 = pneg %p134
        $region54: #{tpu_custom_call.1} parent=39 // pred_check_branch
          %317 = sbr.rel (%p315) target = $region56
        $region55: #{tpu_custom_call.1} parent=39 // pred_region
          %318 = dma.done [#allocation10], 4096
        $region56: #{tpu_custom_call.1} parent=39 // pred_fallthru
          _
        %s319 = sand.u32 %s48, 1
        %s320 = scalar_lea.sflag [#allocation4], %s319
        %s321 = sand.u32 %s48, 1
        %s322 = smul.addr %s321, 64
        %s323 = scalar_lea.vmem [#allocation3], %s322
        %p324 = pneg %p61
        %p325 = pneg %p58
        %s326 = sand.u32 %s26, 1
        %s327 = scalar_lea.sflag [#allocation7], %s326
        %s328 = sand.u32 %s74, 1
        %s329 = smul.addr %s328, 64
        %s330 = scalar_lea.vmem [#allocation6], %s329
        %p331 = pneg %p87
        %p332 = pneg %p84
        %s333 = sand.u32 %s26, 1
        %s334 = scalar_lea.sflag [#allocation7], %s333
        %s335 = sand.u32 %s100, 1
        %s336 = smul.addr %s335, 64
        %s337 = scalar_lea.vmem [#allocation8], %s336
        %p338 = pneg %p113
        %p339 = pneg %p110
        %p340 = pneg %p134
        %p341 = pneg %p131
        %p342 = pneg %p155
        %p343 = pneg %p152
        %p344 = pneg %p181
        %p345 = pneg %p178
        %s346 = sand.u32 %s168, 1
        %s347 = scalar_lea.sflag [#allocation5], %s346
        %s348 = sand.u32 %s168, 1
        %s349 = smul.addr %s348, 64
        %s350 = scalar_lea.vmem [#allocation11], %s349
        %s351 = smul.u32 16, %s30
        %s352 = smul.u32 16, %s30
        %s353 = smul.u32 16, %s31
        %s354 = smul.u32 16, %s30
        %p356 = scmp.eq.s32.totalorder %s31, 0
        // Predicated region
        $region57: #{tpu_custom_call.1} parent=39 // pred_check
          %p357 = pneg %p356
        $region58: #{tpu_custom_call.1} parent=39 // pred_check_branch
          %359 = sbr.rel (%p357) target = $region60
        $region59: #{tpu_custom_call.1} parent=39 // pred_region
          %v360 = vld [vmem:[%s301] sm:$0xf]
          %v361 = vld [vmem:[%s301 + $0x4] sm:$0xf]
          %v362 = vld [vmem:[%s301 + $0x8] sm:$0xf]
          %v363 = vld [vmem:[%s301 + $0xc] sm:$0xf]
          %v364 = vld [vmem:[%s301 + $0x10] sm:$0xf]
          %v365 = vld [vmem:[%s301 + $0x14] sm:$0xf]
          %v366 = vld [vmem:[%s301 + $0x18] sm:$0xf]
          %v367 = vld [vmem:[%s301 + $0x1c] sm:$0xf]
          %v368 = vld [vmem:[%s301 + $0x20] sm:$0xf]
          %v369 = vld [vmem:[%s301 + $0x24] sm:$0xf]
          %v370 = vld [vmem:[%s301 + $0x28] sm:$0xf]
          %v371 = vld [vmem:[%s301 + $0x2c] sm:$0xf]
          %v372 = vld [vmem:[%s301 + $0x30] sm:$0xf]
          %v373 = vld [vmem:[%s301 + $0x34] sm:$0xf]
          %v374 = vld [vmem:[%s301 + $0x38] sm:$0xf]
          %v375 = vld [vmem:[%s301 + $0x3c] sm:$0xf]
          %v376 = vunpack.c.l.bf16 %v360
          %v377 = vunpack.c.l.bf16 %v361
          %v378 = vunpack.c.l.bf16 %v362
          %v379 = vunpack.c.l.bf16 %v363
          %v380 = vunpack.c.l.bf16 %v364
          %v381 = vunpack.c.l.bf16 %v365
          %v382 = vunpack.c.l.bf16 %v366
          %v383 = vunpack.c.l.bf16 %v367
          %v384 = vunpack.c.l.bf16 %v368
          %v385 = vunpack.c.l.bf16 %v369
          %v386 = vunpack.c.l.bf16 %v370
          %v387 = vunpack.c.l.bf16 %v371
          %v388 = vunpack.c.l.bf16 %v372
          %v389 = vunpack.c.l.bf16 %v373
          %v390 = vunpack.c.l.bf16 %v374
          %v391 = vunpack.c.l.bf16 %v375
          %392 = vst [vmem:[#allocation2] sm:$0xff] %v376
          %393 = vst [vmem:[#allocation2 + $0x10] sm:$0xff] %v377
          %394 = vst [vmem:[#allocation2 + $0x20] sm:$0xff] %v378
          %395 = vst [vmem:[#allocation2 + $0x30] sm:$0xff] %v379
          %396 = vst [vmem:[#allocation2 + $0x40] sm:$0xff] %v380
          %397 = vst [vmem:[#allocation2 + $0x50] sm:$0xff] %v381
          %398 = vst [vmem:[#allocation2 + $0x60] sm:$0xff] %v382
          %399 = vst [vmem:[#allocation2 + $0x70] sm:$0xff] %v383
          %400 = vst [vmem:[#allocation2 + $0x80] sm:$0xff] %v384
          %401 = vst [vmem:[#allocation2 + $0x90] sm:$0xff] %v385
          %402 = vst [vmem:[#allocation2 + $0xa0] sm:$0xff] %v386
          %403 = vst [vmem:[#allocation2 + $0xb0] sm:$0xff] %v387
          %404 = vst [vmem:[#allocation2 + $0xc0] sm:$0xff] %v388
          %405 = vst [vmem:[#allocation2 + $0xd0] sm:$0xff] %v389
          %406 = vst [vmem:[#allocation2 + $0xe0] sm:$0xff] %v390
          %407 = vst [vmem:[#allocation2 + $0xf0] sm:$0xff] %v391
          %408 = vst [vmem:[#allocation2 + $0x8] sm:$0xff] 0.0
          %409 = vst [vmem:[#allocation2 + $0x18] sm:$0xff] 0.0
          %410 = vst [vmem:[#allocation2 + $0x28] sm:$0xff] 0.0
          %411 = vst [vmem:[#allocation2 + $0x38] sm:$0xff] 0.0
          %412 = vst [vmem:[#allocation2 + $0x48] sm:$0xff] 0.0
          %413 = vst [vmem:[#allocation2 + $0x58] sm:$0xff] 0.0
          %414 = vst [vmem:[#allocation2 + $0x68] sm:$0xff] 0.0
          %415 = vst [vmem:[#allocation2 + $0x78] sm:$0xff] 0.0
          %416 = vst [vmem:[#allocation2 + $0x88] sm:$0xff] 0.0
          %417 = vst [vmem:[#allocation2 + $0x98] sm:$0xff] 0.0
          %418 = vst [vmem:[#allocation2 + $0xa8] sm:$0xff] 0.0
          %419 = vst [vmem:[#allocation2 + $0xb8] sm:$0xff] 0.0
          %420 = vst [vmem:[#allocation2 + $0xc8] sm:$0xff] 0.0
          %421 = vst [vmem:[#allocation2 + $0xd8] sm:$0xff] 0.0
          %422 = vst [vmem:[#allocation2 + $0xe8] sm:$0xff] 0.0
          %423 = vst [vmem:[#allocation2 + $0xf8] sm:$0xff] 0.0
        $region60: #{tpu_custom_call.1} parent=39 // pred_fallthru
          _
        %v424 = vld [vmem:[#allocation2 + $0x8] sm:$0xff]
        %v425 = vld [vmem:[#allocation2 + $0x18] sm:$0xff]
        %v426 = vld [vmem:[#allocation2 + $0x28] sm:$0xff]
        %v427 = vld [vmem:[#allocation2 + $0x38] sm:$0xff]
        %v428 = vld [vmem:[#allocation2 + $0x48] sm:$0xff]
        %v429 = vld [vmem:[#allocation2 + $0x58] sm:$0xff]
        %v430 = vld [vmem:[#allocation2 + $0x68] sm:$0xff]
        %v431 = vld [vmem:[#allocation2 + $0x78] sm:$0xff]
        %v432 = vld [vmem:[#allocation2 + $0x88] sm:$0xff]
        %v433 = vld [vmem:[#allocation2 + $0x98] sm:$0xff]
        %v434 = vld [vmem:[#allocation2 + $0xa8] sm:$0xff]
        %v435 = vld [vmem:[#allocation2 + $0xb8] sm:$0xff]
        %v436 = vld [vmem:[#allocation2 + $0xc8] sm:$0xff]
        %v437 = vld [vmem:[#allocation2 + $0xd8] sm:$0xff]
        %v438 = vld [vmem:[#allocation2 + $0xe8] sm:$0xff]
        %v439 = vld [vmem:[#allocation2 + $0xf8] sm:$0xff]
        %v440 = vld [vmem:[%s292] sm:$0xf]
        %v441 = vld [vmem:[%s292 + $0x4] sm:$0xf]
        %v442 = vld [vmem:[%s292 + $0x8] sm:$0xf]
        %v443 = vld [vmem:[%s292 + $0xc] sm:$0xf]
        %v444 = vld [vmem:[%s292 + $0x10] sm:$0xf]
        %v445 = vld [vmem:[%s292 + $0x14] sm:$0xf]
        %v446 = vld [vmem:[%s292 + $0x18] sm:$0xf]
        %v447 = vld [vmem:[%s292 + $0x1c] sm:$0xf]
        %v448 = vld [vmem:[%s292 + $0x20] sm:$0xf]
        %v449 = vld [vmem:[%s292 + $0x24] sm:$0xf]
        %v450 = vld [vmem:[%s292 + $0x28] sm:$0xf]
        %v451 = vld [vmem:[%s292 + $0x2c] sm:$0xf]
        %v452 = vld [vmem:[%s292 + $0x30] sm:$0xf]
        %v453 = vld [vmem:[%s292 + $0x34] sm:$0xf]
        %v454 = vld [vmem:[%s292 + $0x38] sm:$0xf]
        %v455 = vld [vmem:[%s292 + $0x3c] sm:$0xf]
        %v456 = vld [vmem:[%s310] sm:$0xf]
        %v457 = vld [vmem:[%s310 + $0x4] sm:$0xf]
        %v458 = vld [vmem:[%s310 + $0x8] sm:$0xf]
        %v459 = vld [vmem:[%s310 + $0xc] sm:$0xf]
        %v460 = vld [vmem:[%s310 + $0x10] sm:$0xf]
        %v461 = vld [vmem:[%s310 + $0x14] sm:$0xf]
        %v462 = vld [vmem:[%s310 + $0x18] sm:$0xf]
        %v463 = vld [vmem:[%s310 + $0x1c] sm:$0xf]
        %v464 = vld [vmem:[%s310 + $0x20] sm:$0xf]
        %v465 = vld [vmem:[%s310 + $0x24] sm:$0xf]
        %v466 = vld [vmem:[%s310 + $0x28] sm:$0xf]
        %v467 = vld [vmem:[%s310 + $0x2c] sm:$0xf]
        %v468 = vld [vmem:[%s310 + $0x30] sm:$0xf]
        %v469 = vld [vmem:[%s310 + $0x34] sm:$0xf]
        %v470 = vld [vmem:[%s310 + $0x38] sm:$0xf]
        %v471 = vld [vmem:[%s310 + $0x3c] sm:$0xf]
        %v488 = vunpack.c.l.b16 %v440
        %v489 = vunpack.c.l.b16 %v441
        %v490 = vunpack.c.l.b16 %v442
        %v491 = vunpack.c.l.b16 %v443
        %v492 = vunpack.c.l.b16 %v444
        %v493 = vunpack.c.l.b16 %v445
        %v494 = vunpack.c.l.b16 %v446
        %v495 = vunpack.c.l.b16 %v447
        %v496 = vunpack.c.l.b16 %v448
        %v497 = vunpack.c.l.b16 %v449
        %v498 = vunpack.c.l.b16 %v450
        %v499 = vunpack.c.l.b16 %v451
        %v500 = vunpack.c.l.b16 %v452
        %v501 = vunpack.c.l.b16 %v453
        %v502 = vunpack.c.l.b16 %v454
        %v503 = vunpack.c.l.b16 %v455
        %v504 = vpack.c.b16 %v489, %v488
        %v505 = vpack.c.b16 %v491, %v490
        %v506 = vpack.c.b16 %v493, %v492
        %v507 = vpack.c.b16 %v495, %v494
        %v508 = vpack.c.b16 %v497, %v496
        %v509 = vpack.c.b16 %v499, %v498
        %v510 = vpack.c.b16 %v501, %v500
        %v511 = vpack.c.b16 %v503, %v502
        %v536 = vunpack.c.l.b16 %v456
        %v537 = vunpack.c.l.b16 %v457
        %v538 = vunpack.c.l.b16 %v458
        %v539 = vunpack.c.l.b16 %v459
        %v540 = vunpack.c.l.b16 %v460
        %v541 = vunpack.c.l.b16 %v461
        %v542 = vunpack.c.l.b16 %v462
        %v543 = vunpack.c.l.b16 %v463
        %v544 = vunpack.c.l.b16 %v464
        %v545 = vunpack.c.l.b16 %v465
        %v546 = vunpack.c.l.b16 %v466
        %v547 = vunpack.c.l.b16 %v467
        %v548 = vunpack.c.l.b16 %v468
        %v549 = vunpack.c.l.b16 %v469
        %v550 = vunpack.c.l.b16 %v470
        %v551 = vunpack.c.l.b16 %v471
        %v552 = vpack.c.b16 %v537, %v536
        %v553 = vpack.c.b16 %v539, %v538
        %v554 = vpack.c.b16 %v541, %v540
        %v555 = vpack.c.b16 %v543, %v542
        %v556 = vpack.c.b16 %v545, %v544
        %v557 = vpack.c.b16 %v547, %v546
        %v558 = vpack.c.b16 %v549, %v548
        %v559 = vpack.c.b16 %v551, %v550
        %568 = vmatprep.subr.bf16.mxu0 0
        %569 = vmatpush1.bf16.msra.mxu0 %v552
        %570 = vmatprep.subr.bf16.mxu0 0
        %571 = vmatpush1.bf16.msra.mxu0 %v553
        %572 = vmatprep.subr.bf16.mxu0 0
        %573 = vmatpush1.bf16.msra.mxu0 %v554
        %574 = vmatprep.subr.bf16.mxu0 0
        %575 = vmatpush1.bf16.msra.mxu0 %v555
        %576 = vmatprep.subr.bf16.mxu0 0
        %577 = vmatpush1.bf16.msra.mxu0 %v556
        %578 = vmatprep.subr.bf16.mxu0 0
        %579 = vmatpush1.bf16.msra.mxu0 %v557
        %580 = vmatprep.subr.bf16.mxu0 0
        %581 = vmatpush1.bf16.msra.mxu0 %v558
        %582 = vmatprep.subr.bf16.mxu0 0
        %583 = vmatpush1.bf16.msra.mxu0 %v559
        %584 = vmatprep.subr.bf16.mxu0 0
        %585 = vmatpush1.bf16.msra.mxu0 0
        %586 = vmatprep.subr.bf16.mxu0 0
        %587 = vmatpush1.bf16.msra.mxu0 0
        %588 = vmatprep.subr.bf16.mxu0 0
        %589 = vmatpush1.bf16.msra.mxu0 0
        %590 = vmatprep.subr.bf16.mxu0 0
        %591 = vmatpush1.bf16.msra.mxu0 0
        %592 = vmatprep.subr.bf16.mxu0 0
        %593 = vmatpush1.bf16.msra.mxu0 0
        %594 = vmatprep.subr.bf16.mxu0 0
        %595 = vmatpush1.bf16.msra.mxu0 0
        %596 = vmatprep.subr.bf16.mxu0 0
        %597 = vmatpush1.bf16.msra.mxu0 0
        %598 = vmatprep.subr.bf16.mxu0 0
        %599 = vmatpush1.bf16.msra.mxu0 0
        %600 = vmatprep.mubr.bf16.mxu0 0
        %601 = vmatmul.mubr.bf16.gmra.mrb[0].mxu0 %v504
        %v602 = vpop.f32.mrb[0].mxu0
        %v603 = vadd.f32 0.0, %v602
        %v604 = vpop.f32.mrb[0].mxu0
        %v605 = vpop.f32.mrb[0].mxu0
        %v606 = vadd.f32 0.0, %v605
        %v607 = vpop.f32.mrb[0].mxu0
        %608 = vmatprep.mubr.bf16.mxu0 0
        %609 = vmatmul.mubr.bf16.gmra.mrb[0].mxu0 %v505
        %v610 = vpop.f32.mrb[0].mxu0
        %v611 = vadd.f32 0.0, %v610
        %v612 = vpop.f32.mrb[0].mxu0
        %v613 = vpop.f32.mrb[0].mxu0
        %v614 = vadd.f32 0.0, %v613
        %v615 = vpop.f32.mrb[0].mxu0
        %616 = vmatprep.mubr.bf16.mxu0 0
        %617 = vmatmul.mubr.bf16.gmra.mrb[0].mxu0 %v506
        %v618 = vpop.f32.mrb[0].mxu0
        %v619 = vadd.f32 0.0, %v618
        %v620 = vpop.f32.mrb[0].mxu0
        %v621 = vpop.f32.mrb[0].mxu0
        %v622 = vadd.f32 0.0, %v621
        %v623 = vpop.f32.mrb[0].mxu0
        %624 = vmatprep.mubr.bf16.mxu0 0
        %625 = vmatmul.mubr.bf16.gmra.mrb[0].mxu0 %v507
        %v626 = vpop.f32.mrb[0].mxu0
        %v627 = vadd.f32 0.0, %v626
        %v628 = vpop.f32.mrb[0].mxu0
        %v629 = vpop.f32.mrb[0].mxu0
        %v630 = vadd.f32 0.0, %v629
        %v631 = vpop.f32.mrb[0].mxu0
        %632 = vmatprep.mubr.bf16.mxu0 0
        %633 = vmatmul.mubr.bf16.gmra.mrb[0].mxu0 %v508
        %v634 = vpop.f32.mrb[0].mxu0
        %v635 = vadd.f32 0.0, %v634
        %v636 = vpop.f32.mrb[0].mxu0
        %v637 = vpop.f32.mrb[0].mxu0
        %v638 = vadd.f32 0.0, %v637
        %v639 = vpop.f32.mrb[0].mxu0
        %640 = vmatprep.mubr.bf16.mxu0 0
        %641 = vmatmul.mubr.bf16.gmra.mrb[0].mxu0 %v509
        %v642 = vpop.f32.mrb[0].mxu0
        %v643 = vadd.f32 0.0, %v642
        %v644 = vpop.f32.mrb[0].mxu0
        %v645 = vpop.f32.mrb[0].mxu0
        %v646 = vadd.f32 0.0, %v645
        %v647 = vpop.f32.mrb[0].mxu0
        %648 = vmatprep.mubr.bf16.mxu0 0
        %649 = vmatmul.mubr.bf16.gmra.mrb[0].mxu0 %v510
        %v650 = vpop.f32.mrb[0].mxu0
        %v651 = vadd.f32 0.0, %v650
        %v652 = vpop.f32.mrb[0].mxu0
        %v653 = vpop.f32.mrb[0].mxu0
        %v654 = vadd.f32 0.0, %v653
        %v655 = vpop.f32.mrb[0].mxu0
        %656 = vmatprep.mubr.bf16.mxu0 0
        %657 = vmatmul.mubr.bf16.gmra.mrb[0].mxu0 %v511
        %v658 = vpop.f32.mrb[0].mxu0
        %v659 = vadd.f32 0.0, %v658
        %v660 = vpop.f32.mrb[0].mxu0
        %v661 = vpop.f32.mrb[0].mxu0
        %v662 = vadd.f32 0.0, %v661
        %v663 = vpop.f32.mrb[0].mxu0
        %664 = vdwg.mxu0
        %v665 = vadd.f32 %v424, %v603
        %v666 = vadd.f32 %v425, %v606
        %v667 = vadd.f32 %v426, %v611
        %v668 = vadd.f32 %v427, %v614
        %v669 = vadd.f32 %v428, %v619
        %v670 = vadd.f32 %v429, %v622
        %v671 = vadd.f32 %v430, %v627
        %v672 = vadd.f32 %v431, %v630
        %v673 = vadd.f32 %v432, %v635
        %v674 = vadd.f32 %v433, %v638
        %v675 = vadd.f32 %v434, %v643
        %v676 = vadd.f32 %v435, %v646
        %v677 = vadd.f32 %v436, %v651
        %v678 = vadd.f32 %v437, %v654
        %v679 = vadd.f32 %v438, %v659
        %v680 = vadd.f32 %v439, %v662
        %681 = vst [vmem:[#allocation2 + $0x8] sm:$0xff] %v665
        %682 = vst [vmem:[#allocation2 + $0x18] sm:$0xff] %v666
        %683 = vst [vmem:[#allocation2 + $0x28] sm:$0xff] %v667
        %684 = vst [vmem:[#allocation2 + $0x38] sm:$0xff] %v668
        %685 = vst [vmem:[#allocation2 + $0x48] sm:$0xff] %v669
        %686 = vst [vmem:[#allocation2 + $0x58] sm:$0xff] %v670
        %687 = vst [vmem:[#allocation2 + $0x68] sm:$0xff] %v671
        %688 = vst [vmem:[#allocation2 + $0x78] sm:$0xff] %v672
        %689 = vst [vmem:[#allocation2 + $0x88] sm:$0xff] %v673
        %690 = vst [vmem:[#allocation2 + $0x98] sm:$0xff] %v674
        %691 = vst [vmem:[#allocation2 + $0xa8] sm:$0xff] %v675
        %692 = vst [vmem:[#allocation2 + $0xb8] sm:$0xff] %v676
        %693 = vst [vmem:[#allocation2 + $0xc8] sm:$0xff] %v677
        %694 = vst [vmem:[#allocation2 + $0xd8] sm:$0xff] %v678
        %695 = vst [vmem:[#allocation2 + $0xe8] sm:$0xff] %v679
        %696 = vst [vmem:[#allocation2 + $0xf8] sm:$0xff] %v680
        %p697 = scmp.eq.s32.totalorder %s31, 1
        // Predicated region
        $region61: #{tpu_custom_call.1} parent=39 // pred_check
          %p698 = pneg %p697
        $region62: #{tpu_custom_call.1} parent=39 // pred_check_branch
          %700 = sbr.rel (%p698) target = $region64
        $region63: #{tpu_custom_call.1} parent=39 // pred_region
          %v701 = vld [vmem:[#allocation2] sm:$0xff]
          %v702 = vld [vmem:[#allocation2 + $0x8] sm:$0xff]
          %v703 = vld [vmem:[#allocation2 + $0x10] sm:$0xff]
          %v704 = vld [vmem:[#allocation2 + $0x18] sm:$0xff]
          %v705 = vld [vmem:[#allocation2 + $0x20] sm:$0xff]
          %v706 = vld [vmem:[#allocation2 + $0x28] sm:$0xff]
          %v707 = vld [vmem:[#allocation2 + $0x30] sm:$0xff]
          %v708 = vld [vmem:[#allocation2 + $0x38] sm:$0xff]
          %v709 = vld [vmem:[#allocation2 + $0x40] sm:$0xff]
          %v710 = vld [vmem:[#allocation2 + $0x48] sm:$0xff]
          %v711 = vld [vmem:[#allocation2 + $0x50] sm:$0xff]
          %v712 = vld [vmem:[#allocation2 + $0x58] sm:$0xff]
          %v713 = vld [vmem:[#allocation2 + $0x60] sm:$0xff]
          %v714 = vld [vmem:[#allocation2 + $0x68] sm:$0xff]
          %v715 = vld [vmem:[#allocation2 + $0x70] sm:$0xff]
          %v716 = vld [vmem:[#allocation2 + $0x78] sm:$0xff]
          %v717 = vld [vmem:[#allocation2 + $0x80] sm:$0xff]
          %v718 = vld [vmem:[#allocation2 + $0x88] sm:$0xff]
          %v719 = vld [vmem:[#allocation2 + $0x90] sm:$0xff]
          %v720 = vld [vmem:[#allocation2 + $0x98] sm:$0xff]
          %v721 = vld [vmem:[#allocation2 + $0xa0] sm:$0xff]
          %v722 = vld [vmem:[#allocation2 + $0xa8] sm:$0xff]
          %v723 = vld [vmem:[#allocation2 + $0xb0] sm:$0xff]
          %v724 = vld [vmem:[#allocation2 + $0xb8] sm:$0xff]
          %v725 = vld [vmem:[#allocation2 + $0xc0] sm:$0xff]
          %v726 = vld [vmem:[#allocation2 + $0xc8] sm:$0xff]
          %v727 = vld [vmem:[#allocation2 + $0xd0] sm:$0xff]
          %v728 = vld [vmem:[#allocation2 + $0xd8] sm:$0xff]
          %v729 = vld [vmem:[#allocation2 + $0xe0] sm:$0xff]
          %v730 = vld [vmem:[#allocation2 + $0xe8] sm:$0xff]
          %v731 = vld [vmem:[#allocation2 + $0xf0] sm:$0xff]
          %v732 = vld [vmem:[#allocation2 + $0xf8] sm:$0xff]
          %v733 = vld [vmem:[#allocation9] sm:$0xff]
          %v734 = vld [vmem:[#allocation9 + $0x8] sm:$0xff]
          %v735 = vld [vmem:[#allocation9 + $0x10] sm:$0xff]
          %v736 = vld [vmem:[#allocation9 + $0x18] sm:$0xff]
          %v737 = vld [vmem:[#allocation9 + $0x20] sm:$0xff]
          %v738 = vld [vmem:[#allocation9 + $0x28] sm:$0xff]
          %v739 = vld [vmem:[#allocation9 + $0x30] sm:$0xff]
          %v740 = vld [vmem:[#allocation9 + $0x38] sm:$0xff]
          %v741 = vld [vmem:[#allocation9 + $0x40] sm:$0xff]
          %v742 = vld [vmem:[#allocation9 + $0x48] sm:$0xff]
          %v743 = vld [vmem:[#allocation9 + $0x50] sm:$0xff]
          %v744 = vld [vmem:[#allocation9 + $0x58] sm:$0xff]
          %v745 = vld [vmem:[#allocation9 + $0x60] sm:$0xff]
          %v746 = vld [vmem:[#allocation9 + $0x68] sm:$0xff]
          %v747 = vld [vmem:[#allocation9 + $0x70] sm:$0xff]
          %v748 = vld [vmem:[#allocation9 + $0x78] sm:$0xff]
          %v749 = vld [vmem:[#allocation9 + $0x80] sm:$0xff]
          %v750 = vld [vmem:[#allocation9 + $0x88] sm:$0xff]
          %v751 = vld [vmem:[#allocation9 + $0x90] sm:$0xff]
          %v752 = vld [vmem:[#allocation9 + $0x98] sm:$0xff]
          %v753 = vld [vmem:[#allocation9 + $0xa0] sm:$0xff]
          %v754 = vld [vmem:[#allocation9 + $0xa8] sm:$0xff]
          %v755 = vld [vmem:[#allocation9 + $0xb0] sm:$0xff]
          %v756 = vld [vmem:[#allocation9 + $0xb8] sm:$0xff]
          %v757 = vld [vmem:[#allocation9 + $0xc0] sm:$0xff]
          %v758 = vld [vmem:[#allocation9 + $0xc8] sm:$0xff]
          %v759 = vld [vmem:[#allocation9 + $0xd0] sm:$0xff]
          %v760 = vld [vmem:[#allocation9 + $0xd8] sm:$0xff]
          %v761 = vld [vmem:[#allocation9 + $0xe0] sm:$0xff]
          %v762 = vld [vmem:[#allocation9 + $0xe8] sm:$0xff]
          %v763 = vld [vmem:[#allocation9 + $0xf0] sm:$0xff]
          %v764 = vld [vmem:[#allocation9 + $0xf8] sm:$0xff]
          %v765 = vld [vmem:[%s4] sm:$0x1]
          %v767 = vlaneseq
          %v768 = vshrl.u32 %v767, 7
          %v769 = vsub.s32 0, %v768
          %v770 = vrot.slane %v765, %v769
          %772 = vmatprep.subr.mxu0 0.0
          %773 = vmatpush1.msra.mxu0 %v733
          %774 = vmatprep.subr.mxu0 0.0
          %775 = vmatpush1.msra.mxu0 %v734
          %776 = vmatprep.subr.mxu0 0.0
          %777 = vmatpush1.msra.mxu0 %v735
          %778 = vmatprep.subr.mxu0 0.0
          %779 = vmatpush1.msra.mxu0 %v736
          %780 = vmatprep.subr.mxu0 0.0
          %781 = vmatpush1.msra.mxu0 %v737
          %782 = vmatprep.subr.mxu0 0.0
          %783 = vmatpush1.msra.mxu0 %v738
          %784 = vmatprep.subr.mxu0 0.0
          %785 = vmatpush1.msra.mxu0 %v739
          %786 = vmatprep.subr.mxu0 0.0
          %787 = vmatpush1.msra.mxu0 %v740
          %788 = vmatprep.subr.mxu0 0.0
          %789 = vmatpush1.msra.mxu0 %v741
          %790 = vmatprep.subr.mxu0 0.0
          %791 = vmatpush1.msra.mxu0 %v742
          %792 = vmatprep.subr.mxu0 0.0
          %793 = vmatpush1.msra.mxu0 %v743
          %794 = vmatprep.subr.mxu0 0.0
          %795 = vmatpush1.msra.mxu0 %v744
          %796 = vmatprep.subr.mxu0 0.0
          %797 = vmatpush1.msra.mxu0 %v745
          %798 = vmatprep.subr.mxu0 0.0
          %799 = vmatpush1.msra.mxu0 %v746
          %800 = vmatprep.subr.mxu0 0.0
          %801 = vmatpush1.msra.mxu0 %v747
          %802 = vmatprep.subr.mxu0 0.0
          %803 = vmatpush1.msra.mxu0 %v748
          %804 = vmatprep.subr.mxu0 0.0
          %805 = vmatpush1.msra.mxu0 %v749
          %806 = vmatprep.subr.mxu0 0.0
          %807 = vmatpush1.msra.mxu0 %v750
          %808 = vmatprep.subr.mxu0 0.0
          %809 = vmatpush1.msra.mxu0 %v751
          %810 = vmatprep.subr.mxu0 0.0
          %811 = vmatpush1.msra.mxu0 %v752
          %812 = vmatprep.subr.mxu0 0.0
          %813 = vmatpush1.msra.mxu0 %v753
          %814 = vmatprep.subr.mxu0 0.0
          %815 = vmatpush1.msra.mxu0 %v754
          %816 = vmatprep.subr.mxu0 0.0
          %817 = vmatpush1.msra.mxu0 %v755
          %818 = vmatprep.subr.mxu0 0.0
          %819 = vmatpush1.msra.mxu0 %v756
          %820 = vmatprep.subr.mxu0 0.0
          %821 = vmatpush1.msra.mxu0 %v757
          %822 = vmatprep.subr.mxu0 0.0
          %823 = vmatpush1.msra.mxu0 %v758
          %824 = vmatprep.subr.mxu0 0.0
          %825 = vmatpush1.msra.mxu0 %v759
          %826 = vmatprep.subr.mxu0 0.0
          %827 = vmatpush1.msra.mxu0 %v760
          %828 = vmatprep.subr.mxu0 0.0
          %829 = vmatpush1.msra.mxu0 %v761
          %830 = vmatprep.subr.mxu0 0.0
          %831 = vmatpush1.msra.mxu0 %v762
          %832 = vmatprep.subr.mxu0 0.0
          %833 = vmatpush1.msra.mxu0 %v763
          %834 = vmatprep.subr.mxu0 0.0
          %835 = vmatpush1.msra.mxu0 %v764
          %836 = vmatprep.mubr.f32.mxu0 %v702
          %837 = vmatmul.mubr.f32.gmra.mrb[0].mxu0 %v701
          %v838 = vpop.f32.mrb[0].mxu0
          %v839 = vadd.f32 %v770, %v838
          %v840 = vpop.f32.mrb[0].mxu0
          %841 = vmatprep.mubr.f32.mxu0 %v704
          %842 = vmatmul.mubr.f32.gmra.mrb[0].mxu0 %v703
          %v843 = vpop.f32.mrb[0].mxu0
          %v844 = vadd.f32 %v770, %v843
          %v845 = vpop.f32.mrb[0].mxu0
          %846 = vmatprep.mubr.f32.mxu0 %v706
          %847 = vmatmul.mubr.f32.gmra.mrb[0].mxu0 %v705
          %v848 = vpop.f32.mrb[0].mxu0
          %v849 = vadd.f32 %v770, %v848
          %v850 = vpop.f32.mrb[0].mxu0
          %851 = vmatprep.mubr.f32.mxu0 %v708
          %852 = vmatmul.mubr.f32.gmra.mrb[0].mxu0 %v707
          %v853 = vpop.f32.mrb[0].mxu0
          %v854 = vadd.f32 %v770, %v853
          %v855 = vpop.f32.mrb[0].mxu0
          %856 = vmatprep.mubr.f32.mxu0 %v710
          %857 = vmatmul.mubr.f32.gmra.mrb[0].mxu0 %v709
          %v858 = vpop.f32.mrb[0].mxu0
          %v859 = vadd.f32 %v770, %v858
          %v860 = vpop.f32.mrb[0].mxu0
          %861 = vmatprep.mubr.f32.mxu0 %v712
          %862 = vmatmul.mubr.f32.gmra.mrb[0].mxu0 %v711
          %v863 = vpop.f32.mrb[0].mxu0
          %v864 = vadd.f32 %v770, %v863
          %v865 = vpop.f32.mrb[0].mxu0
          %866 = vmatprep.mubr.f32.mxu0 %v714
          %867 = vmatmul.mubr.f32.gmra.mrb[0].mxu0 %v713
          %v868 = vpop.f32.mrb[0].mxu0
          %v869 = vadd.f32 %v770, %v868
          %v870 = vpop.f32.mrb[0].mxu0
          %871 = vmatprep.mubr.f32.mxu0 %v716
          %872 = vmatmul.mubr.f32.gmra.mrb[0].mxu0 %v715
          %v873 = vpop.f32.mrb[0].mxu0
          %v874 = vadd.f32 %v770, %v873
          %v875 = vpop.f32.mrb[0].mxu0
          %876 = vmatprep.mubr.f32.mxu0 %v718
          %877 = vmatmul.mubr.f32.gmra.mrb[0].mxu0 %v717
          %v878 = vpop.f32.mrb[0].mxu0
          %v879 = vadd.f32 %v770, %v878
          %v880 = vpop.f32.mrb[0].mxu0
          %881 = vmatprep.mubr.f32.mxu0 %v720
          %882 = vmatmul.mubr.f32.gmra.mrb[0].mxu0 %v719
          %v883 = vpop.f32.mrb[0].mxu0
          %v884 = vadd.f32 %v770, %v883
          %v885 = vpop.f32.mrb[0].mxu0
          %886 = vmatprep.mubr.f32.mxu0 %v722
          %887 = vmatmul.mubr.f32.gmra.mrb[0].mxu0 %v721
          %v888 = vpop.f32.mrb[0].mxu0
          %v889 = vadd.f32 %v770, %v888
          %v890 = vpop.f32.mrb[0].mxu0
          %891 = vmatprep.mubr.f32.mxu0 %v724
          %892 = vmatmul.mubr.f32.gmra.mrb[0].mxu0 %v723
          %v893 = vpop.f32.mrb[0].mxu0
          %v894 = vadd.f32 %v770, %v893
          %v895 = vpop.f32.mrb[0].mxu0
          %896 = vmatprep.mubr.f32.mxu0 %v726
          %897 = vmatmul.mubr.f32.gmra.mrb[0].mxu0 %v725
          %v898 = vpop.f32.mrb[0].mxu0
          %v899 = vadd.f32 %v770, %v898
          %v900 = vpop.f32.mrb[0].mxu0
          %901 = vmatprep.mubr.f32.mxu0 %v728
          %902 = vmatmul.mubr.f32.gmra.mrb[0].mxu0 %v727
          %v903 = vpop.f32.mrb[0].mxu0
          %v904 = vadd.f32 %v770, %v903
          %v905 = vpop.f32.mrb[0].mxu0
          %906 = vmatprep.mubr.f32.mxu0 %v730
          %907 = vmatmul.mubr.f32.gmra.mrb[0].mxu0 %v729
          %v908 = vpop.f32.mrb[0].mxu0
          %v909 = vadd.f32 %v770, %v908
          %v910 = vpop.f32.mrb[0].mxu0
          %911 = vmatprep.mubr.f32.mxu0 %v732
          %912 = vmatmul.mubr.f32.gmra.mrb[0].mxu0 %v731
          %v913 = vpop.f32.mrb[0].mxu0
          %v914 = vadd.f32 %v770, %v913
          %v915 = vpop.f32.mrb[0].mxu0
          %916 = vdwg.mxu0
          %v917 = vmax.f32 %v839, 0.0
          %v918 = vmax.f32 %v844, 0.0
          %v919 = vmax.f32 %v849, 0.0
          %v920 = vmax.f32 %v854, 0.0
          %v921 = vmax.f32 %v859, 0.0
          %v922 = vmax.f32 %v864, 0.0
          %v923 = vmax.f32 %v869, 0.0
          %v924 = vmax.f32 %v874, 0.0
          %v925 = vmax.f32 %v879, 0.0
          %v926 = vmax.f32 %v884, 0.0
          %v927 = vmax.f32 %v889, 0.0
          %v928 = vmax.f32 %v894, 0.0
          %v929 = vmax.f32 %v899, 0.0
          %v930 = vmax.f32 %v904, 0.0
          %v931 = vmax.f32 %v909, 0.0
          %v932 = vmax.f32 %v914, 0.0
          %v933 = vpack.c.bf16 %v918, %v917
          %v934 = vpack.c.bf16 %v920, %v919
          %v935 = vpack.c.bf16 %v922, %v921
          %v936 = vpack.c.bf16 %v924, %v923
          %v937 = vpack.c.bf16 %v926, %v925
          %v938 = vpack.c.bf16 %v928, %v927
          %v939 = vpack.c.bf16 %v930, %v929
          %v940 = vpack.c.bf16 %v932, %v931
          %v949 = vunpack.c.l.b16 %v933
          %v950 = vunpack.c.h.b16 %v933
          %v951 = vunpack.c.l.b16 %v934
          %v952 = vunpack.c.h.b16 %v934
          %v953 = vunpack.c.l.b16 %v935
          %v954 = vunpack.c.h.b16 %v935
          %v955 = vunpack.c.l.b16 %v936
          %v956 = vunpack.c.h.b16 %v936
          %v957 = vunpack.c.l.b16 %v937
          %v958 = vunpack.c.h.b16 %v937
          %v959 = vunpack.c.l.b16 %v938
          %v960 = vunpack.c.h.b16 %v938
          %v961 = vunpack.c.l.b16 %v939
          %v962 = vunpack.c.h.b16 %v939
          %v963 = vunpack.c.l.b16 %v940
          %v964 = vunpack.c.h.b16 %v940
          %v965 = vpack.c.b16 %v949, %v949
          %v966 = vpack.c.b16 %v950, %v950
          %v967 = vpack.c.b16 %v951, %v951
          %v968 = vpack.c.b16 %v952, %v952
          %v969 = vpack.c.b16 %v953, %v953
          %v970 = vpack.c.b16 %v954, %v954
          %v971 = vpack.c.b16 %v955, %v955
          %v972 = vpack.c.b16 %v956, %v956
          %v973 = vpack.c.b16 %v957, %v957
          %v974 = vpack.c.b16 %v958, %v958
          %v975 = vpack.c.b16 %v959, %v959
          %v976 = vpack.c.b16 %v960, %v960
          %v977 = vpack.c.b16 %v961, %v961
          %v978 = vpack.c.b16 %v962, %v962
          %v979 = vpack.c.b16 %v963, %v963
          %v980 = vpack.c.b16 %v964, %v964
          %997 = vst [vmem:[%s350] sm:$0xf] %v965
          %998 = vst [vmem:[%s350 + $0x4] sm:$0xf] %v966
          %999 = vst [vmem:[%s350 + $0x8] sm:$0xf] %v967
          %1000 = vst [vmem:[%s350 + $0xc] sm:$0xf] %v968
          %1001 = vst [vmem:[%s350 + $0x10] sm:$0xf] %v969
          %1002 = vst [vmem:[%s350 + $0x14] sm:$0xf] %v970
          %1003 = vst [vmem:[%s350 + $0x18] sm:$0xf] %v971
          %1004 = vst [vmem:[%s350 + $0x1c] sm:$0xf] %v972
          %1005 = vst [vmem:[%s350 + $0x20] sm:$0xf] %v973
          %1006 = vst [vmem:[%s350 + $0x24] sm:$0xf] %v974
          %1007 = vst [vmem:[%s350 + $0x28] sm:$0xf] %v975
          %1008 = vst [vmem:[%s350 + $0x2c] sm:$0xf] %v976
          %1009 = vst [vmem:[%s350 + $0x30] sm:$0xf] %v977
          %1010 = vst [vmem:[%s350 + $0x34] sm:$0xf] %v978
          %1011 = vst [vmem:[%s350 + $0x38] sm:$0xf] %v979
          %1012 = vst [vmem:[%s350 + $0x3c] sm:$0xf] %v980
        $region64: #{tpu_custom_call.1} parent=39 // pred_fallthru
          _
        %s1013 = sand.u32 %s168, 1
        %s1014 = scalar_lea.sflag [#allocation5], %s1013
        %s1015 = sand.u32 %s168, 1
        %s1016 = smul.addr %s1015, 64
        %s1017 = scalar_lea.vmem [#allocation11], %s1016
        // Predicated region
        $region65: #{tpu_custom_call.1} parent=39 // pred_check
          %p1018 = pneg %p178
        $region66: #{tpu_custom_call.1} parent=39 // pred_check_branch
          %1020 = sbr.rel (%p1018) target = $region68
        $region67: #{tpu_custom_call.1} parent=39 // pred_region
          %s1021 = smul.u32 16, %s30
          %s1023 = ssub.s32 1024, 1024
          %1024 = vsyncadd %s1014, %s1023
          %s1025 = smul.addr %s1021, 64
          %s1026 = scalar_lea.hbm %s5, %s1025
          %s1027 = sshll.u32 %s1017, 4
          %s1028 = int_to_ptr.vmem [resolvable:$true] %s1027
          %1033 = dma.vmem_to_hbm [thread:$0]  %s1028, 1024, %s1026, %s1014, 64, 64, 4
        $region68: #{tpu_custom_call.1} parent=39 // pred_fallthru
          _
      $region40: #{tpu_custom_call.1} parent=5 // pred_fallthru
        _
      %p1034 = scmp.le.s32.totalorder 2, %s21
      // Predicated region
      $region69: #{tpu_custom_call.1} parent=5 // pred_check
        %p1035 = pneg %p1034
      $region70: #{tpu_custom_call.1} parent=5 // pred_check_branch
        %1037 = sbr.rel (%p1035) target = $region72
      $region71: #{tpu_custom_call.1} parent=5 // pred_region
        %s1038 = ssub.s32 %s21, 2
        // Predicated region
        $region73: #{tpu_custom_call.1} parent=71 // pred_check
          %p1039 = pneg %p184
        $region74: #{tpu_custom_call.1} parent=71 // pred_check_branch
          %1041 = sbr.rel (%p1039) target = $region76
        $region75: #{tpu_custom_call.1} parent=71 // pred_region
          %s1042 = sand.u32 %s169, 1
          %s1043 = scalar_lea.sflag [#allocation5], %s1042
          %s1044 = sand.u32 %s169, 1
          %s1045 = smul.addr %s1044, 64
          %s1046 = scalar_lea.vmem [#allocation11], %s1045
          %1047 = dma.done %s1043, 1024
        $region76: #{tpu_custom_call.1} parent=71 // pred_fallthru
          _
      $region72: #{tpu_custom_call.1} parent=5 // pred_fallthru
        _
    $region6: #{tpu_custom_call.1} parent=1 // loop_footer
      %s25 = sadd.s32 1, %s21
    $region7: #{tpu_custom_call.1} parent=1 // loop_footer_branch
      %20 = sbr.rel target = $region3
    $region8: #{tpu_custom_call.1} parent=1 // loop_exit
      _
    %1048 = vsyncpa [#allocation4], 1
    %s1049 = scalar_lea.sflag [#allocation4], 1
    %1050 = vsyncpa %s1049, 1
    %1051 = vsyncpa [#allocation7], 1
    %s1052 = scalar_lea.sflag [#allocation7], 1
    %1053 = vsyncpa %s1052, 1
    %1054 = vsyncpa [#allocation10], 1
    %1055 = vsyncpa [#allocation5], 1
    %s1056 = scalar_lea.sflag [#allocation5], 1
    %1057 = vsyncpa %s1056, 1

</llo_original>
